<compile_context>
chip_gen: v7x
topology: tpu7x:2x2x1
jax: 0.10.0
libtpu: 0.0.40
codegen_flags: <defaults>
</compile_context>

<pallas_src>
import functools
from typing import NamedTuple, Optional

import jax
import jax.numpy as jnp
from jax.experimental import pallas as pl
from jax.experimental.pallas import tpu as pltpu


# ---------------------------------------------------------------------------
# Kernels
# ---------------------------------------------------------------------------

def _glu_epilogue(res_f32, tn, out_dtype):
    """res_f32: (tm, 2*tn) f32 = [left | right] (128-lane aligned split)."""
    left = res_f32[:, :tn]
    right = res_f32[:, tn:]
    # sigmoid(right) = 1 / (1 + exp(-right)); exp + approx reciprocal on EUP.
    gate = pl.reciprocal(1.0 + jnp.exp(-right), approx=True)
    return (left * gate).astype(out_dtype)


def _glu_kernel_single_k(x_ref, w_ref, b_ref, o_ref, *, tn):
    """Grid = (m_tiles, n_tiles); whole K in one MXU matmul, no scratch."""
    res = jnp.dot(x_ref[...], w_ref[...], preferred_element_type=jnp.float32)
    res = res + b_ref[...]                      # bias broadcast (1, 2*tn)
    o_ref[...] = _glu_epilogue(res, tn, o_ref.dtype)


def _glu_kernel_multi_k(x_ref, w_ref, b_ref, o_ref, acc_ref, *, tn):
    """Grid = (m_tiles, n_tiles, k_tiles); k innermost reduction, f32 acc."""
    k = pl.program_id(2)
    partial = jnp.dot(x_ref[...], w_ref[...], preferred_element_type=jnp.float32)

    @pl.when(k == 0)
    def _():
        acc_ref[...] = partial                  # no separate zero-init pass

    @pl.when(k != 0)
    def _():
        acc_ref[...] += partial

    @pl.when(k == pl.num_programs(2) - 1)
    def _():
        res = acc_ref[...] + b_ref[...]
        o_ref[...] = _glu_epilogue(res, tn, o_ref.dtype)


# ---------------------------------------------------------------------------
# One-time parameter packing (do NOT call per forward)
# ---------------------------------------------------------------------------

class GLUPackedParams(NamedTuple):
    w_fused: jax.Array          # [n_tiles, K_pad, 2*tn]  (compute dtype)
    b_fused: jax.Array          # [n_tiles, 1, 2*tn]      (f32)
    K: int
    K_pad: int
    N: int
    N_pad: int
    tn: int
    tk: int
    compute_dtype: Optional[jnp.dtype]


def _round_up(x, m):
    return (x + m - 1) // m * m


def _pick_tn(n_pad):
    for c in (512, 256, 128):
        if n_pad % c == 0:
            return c
    return 128  # unreachable: n_pad is always a multiple of 128


def _pick_tk(k):
    """Returns (tk, K_pad)."""
    if k <= 1024:
        return k, k
    for c in (1024, 512, 256, 128):
        if k % c == 0:
            return c, k
    k_pad = _round_up(k, 512)
    return 512, k_pad


def pack_glu_params(w_left, b_left, w_right, b_right, *,
                    compute_dtype=jnp.bfloat16):
    """Pre-pack both projections into a single fused, lane-dense operand.

    Call ONCE at init (it reads/writes the full weights in HBM); reuse the
    result for every forward call.  w_*: [K, N], b_*: [N].
    """
    K, N = w_left.shape
    assert w_right.shape == (K, N)
    assert b_left.shape == (N,) and b_right.shape == (N,)

    N_pad = _round_up(max(N, 128), 128)          # 128-lane aligned split/store
    tn = _pick_tn(N_pad)
    n_tiles = N_pad // tn
    tk, K_pad = _pick_tk(K)

    def pad_w(w):
        return jnp.pad(w, ((0, K_pad - K), (0, N_pad - N)))

    def pad_b(b):
        return jnp.pad(b, (0, N_pad - N))

    wl = pad_w(w_left).reshape(K_pad, n_tiles, tn)
    wr = pad_w(w_right).reshape(K_pad, n_tiles, tn)
    # Per N-tile j the columns are [left_tile_j | right_tile_j].
    w_fused = jnp.transpose(jnp.concatenate([wl, wr], axis=-1), (1, 0, 2))
    if compute_dtype is not None:
        w_fused = w_fused.astype(compute_dtype)

    bl = pad_b(b_left).reshape(n_tiles, 1, tn)
    br = pad_b(b_right).reshape(n_tiles, 1, tn)
    b_fused = jnp.concatenate([bl, br], axis=-1).astype(jnp.float32)

    return GLUPackedParams(w_fused, b_fused, K, K_pad, N, N_pad, tn, tk,
                           compute_dtype)


# ---------------------------------------------------------------------------
# Forward
# ---------------------------------------------------------------------------

def glu_forward(x, params: GLUPackedParams, *, tm_max=512,
                vmem_limit_bytes=48 * 1024 * 1024):
    """x: [..., K]; params from pack_glu_params. Returns [..., N]."""
    *lead, K = x.shape
    assert K == params.K, (K, params.K)

    M = 1
    for d in lead:
        M *= d
    out_dtype = x.dtype

    tn, tk = params.tn, params.tk
    K_pad, N_pad = params.K_pad, params.N_pad
    n_tiles = N_pad // tn
    k_tiles = K_pad // tk

    tm = min(tm_max, _round_up(M, 8))            # sublane-aligned, large M tile
    M_pad = _round_up(M, tm)
    m_tiles = M_pad // tm

    x2 = x.reshape(M, K)
    if params.compute_dtype is not None:
        x2 = x2.astype(params.compute_dtype)
    if M_pad != M or K_pad != K:
        x2 = jnp.pad(x2, ((0, M_pad - M), (0, K_pad - K)))

    # Decode-like short grids: 3-deep weight buffering hides the first DMA.
    w_pipeline = {}
    if m_tiles == 1 and k_tiles <= 2 and n_tiles >= 3:
        w_pipeline = dict(pipeline_mode=pl.Buffered(3))

    if k_tiles == 1:
        kernel = functools.partial(_glu_kernel_single_k, tn=tn)
        grid = (m_tiles, n_tiles)
        in_specs = [
            pl.BlockSpec((tm, tk), lambda i, j: (i, 0)),
            pl.BlockSpec((pl.Squeezed(), tk, 2 * tn),
                         lambda i, j: (j, 0, 0), **w_pipeline),
            pl.BlockSpec((pl.Squeezed(), 1, 2 * tn), lambda i, j: (j, 0, 0)),
        ]
        out_specs = pl.BlockSpec((tm, tn), lambda i, j: (i, j))
        scratch_shapes = []
        dims = ("parallel", "parallel")
    else:
        kernel = functools.partial(_glu_kernel_multi_k, tn=tn)
        grid = (m_tiles, n_tiles, k_tiles)
        in_specs = [
            pl.BlockSpec((tm, tk), lambda i, j, k: (i, k)),
            pl.BlockSpec((pl.Squeezed(), tk, 2 * tn),
                         lambda i, j, k: (j, k, 0), **w_pipeline),
            pl.BlockSpec((pl.Squeezed(), 1, 2 * tn), lambda i, j, k: (j, 0, 0)),
        ]
        out_specs = pl.BlockSpec((tm, tn), lambda i, j, k: (i, j))
        scratch_shapes = [pltpu.VMEM((tm, 2 * tn), jnp.float32)]
        dims = ("parallel", "parallel", "arbitrary")

    out2 = pl.pallas_call(
        kernel,
        out_shape=jax.ShapeDtypeStruct((M_pad, N_pad), out_dtype),
        grid_spec=pltpu.PrefetchScalarGridSpec(
            num_scalar_prefetch=0,
            grid=grid,
            in_specs=in_specs,
            out_specs=out_specs,
            scratch_shapes=scratch_shapes,
        ),
        compiler_params=pltpu.CompilerParams(
            dimension_semantics=dims,
            vmem_limit_bytes=vmem_limit_bytes,
        ),
    )(x2, params.w_fused, params.b_fused)

    out2 = out2[:M, :params.N]
    return out2.reshape(*lead, params.N)


# ---------------------------------------------------------------------------
# Init / reference / tests
# ---------------------------------------------------------------------------

def init_glu_params(key, input_channel, output_channel, dtype=jnp.float32):
    """Mimics nn.Linear default init U(-1/sqrt(K), 1/sqrt(K)); weights [K, N]."""
    k1, k2, k3, k4 = jax.random.split(key, 4)
    bound = 1.0 / (input_channel ** 0.5)
    w_left = jax.random.uniform(k1, (input_channel, output_channel), dtype, -bound, bound)
    b_left = jax.random.uniform(k2, (output_channel,), dtype, -bound, bound)
    w_right = jax.random.uniform(k3, (input_channel, output_channel), dtype, -bound, bound)
    b_right = jax.random.uniform(k4, (output_channel,), dtype, -bound, bound)
    return w_left, b_left, w_right, b_right


def _reference(x, wl, bl, wr, br):
    left = x @ wl + bl
    right = x @ wr + br
    return left * jax.nn.sigmoid(right)


if __name__ == "__main__":
    # --- test 1: small spec-like shapes, f32 operands ------------------------
    kx, kp = jax.random.split(jax.random.PRNGKey(0))
    batch, seq, in_ch, out_ch = 2, 8, 32, 64
    x = jax.random.normal(kx, (batch, seq, in_ch), jnp.float32)
    raw = init_glu_params(kp, in_ch, out_ch)
    packed_f32 = pack_glu_params(*raw, compute_dtype=None)     # packed once
    out = jax.block_until_ready(glu_forward(x, packed_f32))
    ref = _reference(x, *raw)
    assert out.shape == (batch, seq, out_ch)
    assert jnp.allclose(out, ref, atol=1e-2, rtol=1e-2)

    # --- test 2: M padding + N padding, bf16 default path --------------------
    kx2, kp2 = jax.random.split(jax.random.PRNGKey(1))
    x2 = jax.random.normal(kx2, (3, 100, 128), jnp.float32)    # M=300 (padded)
    raw2 = init_glu_params(kp2, 128, 512)
    packed_bf16 = pack_glu_params(*raw2)                       # bf16 operands
    out2 = jax.block_until_ready(glu_forward(x2, packed_bf16))
    ref2 = _reference(x2, *raw2)
    assert out2.shape == (3, 100, 512)
    assert jnp.allclose(out2, ref2, atol=3e-2, rtol=3e-2)

    # --- test 3: K > 1024 exercises the multi-step K reduction path ----------
    kx3, kp3 = jax.random.split(jax.random.PRNGKey(2))
    x3 = jax.random.normal(kx3, (2, 40, 1280), jnp.float32)
    raw3 = init_glu_params(kp3, 1280, 256)
    packed3 = pack_glu_params(*raw3, compute_dtype=None)
    out3 = jax.block_until_ready(glu_forward(x3, packed3))
    ref3 = _reference(x3, *raw3)
    assert out3.shape == (2, 40, 256)
    assert jnp.allclose(out3, ref3, atol=1e-2, rtol=1e-2)

    print("KERNEL_OK")
</pallas_src>

<mosaic_0001>
module attributes {stable_mosaic.version = 11 : i64} {
  func.func @_glu_kernel_single_k(%arg0: i32, %arg1: i32, %arg2: memref<16x32xf32, #tpu.memory_space<vmem>>, %arg3: memref<1x32x256xf32, #tpu.memory_space<vmem>>, %arg4: memref<1x1x256xf32, #tpu.memory_space<vmem>>, %arg5: memref<16x128xf32, #tpu.memory_space<vmem>>) attributes {dimension_semantics = [#tpu.dimension_semantics<parallel>, #tpu.dimension_semantics<parallel>], iteration_bounds = array<i64: 1, 1>, scalar_prefetch = 0 : i64, scratch_operands = 0 : i64, tpu.core_type = #tpu.core_type<tc>, window_params = [{transform_indices = @transform_0, window_bounds = array<i64: 16, 32>}, {transform_indices = @transform_1, window_bounds = array<i64: 1, 32, 256>}, {transform_indices = @transform_2, window_bounds = array<i64: 1, 1, 256>}, {transform_indices = @transform_3, window_bounds = array<i64: 16, 128>}]} {
    %c0 = arith.constant 0 : index
    %c0_0 = arith.constant 0 : index
    %0 = vector.load %arg2[%c0, %c0_0] : memref<16x32xf32, #tpu.memory_space<vmem>>, vector<16x32xf32>
    %c0_1 = arith.constant 0 : index
    %c0_2 = arith.constant 0 : index
    %c0_3 = arith.constant 0 : index
    %1 = vector.load %arg3[%c0_1, %c0_2, %c0_3] : memref<1x32x256xf32, #tpu.memory_space<vmem>>, vector<1x32x256xf32>
    %2 = vector.shape_cast %1 : vector<1x32x256xf32> to vector<32x256xf32>
    %cst = arith.constant dense<0.000000e+00> : vector<16x256xf32>
    %3 = tpu.matmul %0, %2, %cst {dimension_numbers = #tpu.dot_dimension_numbers<[1], [0], [0], [1], [0, 0, 1, 1], [], []>} : vector<16x32xf32>, vector<32x256xf32>, vector<16x256xf32> -> vector<16x256xf32>
    %c0_4 = arith.constant 0 : index
    %c0_5 = arith.constant 0 : index
    %c0_6 = arith.constant 0 : index
    %4 = vector.load %arg4[%c0_4, %c0_5, %c0_6] : memref<1x1x256xf32, #tpu.memory_space<vmem>>, vector<1x1x256xf32>
    %5 = vector.shape_cast %4 : vector<1x1x256xf32> to vector<1x256xf32>
    %6 = vector.broadcast %5 : vector<1x256xf32> to vector<16x256xf32>
    %7 = arith.addf %3, %6 : vector<16x256xf32>
    %8 = vector.extract_strided_slice %7 {offsets = [0, 0], sizes = [16, 128], strides = [1, 1]} : vector<16x256xf32> to vector<16x128xf32>
    %9 = vector.extract_strided_slice %7 {offsets = [0, 128], sizes = [16, 128], strides = [1, 1]} : vector<16x256xf32> to vector<16x128xf32>
    %cst_7 = arith.constant 0.000000e+00 : f32
    %10 = vector.broadcast %cst_7 : f32 to vector<16x128xf32>
    %11 = arith.subf %10, %9 : vector<16x128xf32>
    %12 = math.exp %11 : vector<16x128xf32>
    %cst_8 = arith.constant 1.000000e+00 : f32
    %13 = vector.broadcast %cst_8 : f32 to vector<16x128xf32>
    %14 = arith.addf %13, %12 : vector<16x128xf32>
    %15 = tpu.reciprocal %14 {approx = true} : vector<16x128xf32> -> vector<16x128xf32>
    %16 = arith.mulf %8, %15 : vector<16x128xf32>
    %c0_9 = arith.constant 0 : index
    %c0_10 = arith.constant 0 : index
    %17 = vector.load %arg5[%c0_9, %c0_10] : memref<16x128xf32, #tpu.memory_space<vmem>>, vector<16x128xf32>
    tpu.vector_store %arg5[%c0_9, %c0_10], %16 {strides = array<i32>} : memref<16x128xf32, #tpu.memory_space<vmem>>, vector<16x128xf32>,
    return
  }
  func.func @transform_0(%arg0: i32, %arg1: i32) -> (i32, i32) {
    %c0_i32 = arith.constant 0 : i32
    %c0_i32_0 = arith.constant 0 : i32
    return %arg0, %c0_i32 : i32, i32
  }
  func.func @transform_1(%arg0: i32, %arg1: i32) -> (i32, i32, i32) {
    %c0_i32 = arith.constant 0 : i32
    %c0_i32_0 = arith.constant 0 : i32
    %c0_i32_1 = arith.constant 0 : i32
    return %arg1, %c0_i32, %c0_i32_0 : i32, i32, i32
  }
  func.func @transform_2(%arg0: i32, %arg1: i32) -> (i32, i32, i32) {
    %c0_i32 = arith.constant 0 : i32
    %c0_i32_0 = arith.constant 0 : i32
    %c0_i32_1 = arith.constant 0 : i32
    return %arg1, %c0_i32, %c0_i32_0 : i32, i32, i32
  }
  func.func @transform_3(%arg0: i32, %arg1: i32) -> (i32, i32) {
    %c0_i32 = arith.constant 0 : i32
    return %arg0, %arg1 : i32, i32
  }
}

</mosaic_0001>

<llo_original>
// kernel: tpu_custom_call.1
$region0: #{tpu_custom_call.1}
  #allocation0 [shape = 'u32[]', space=smem, size = 0x4, offset = 0x4, fixed_abs, tag = 'smem constant byte address 0x4 - core index']
  #allocation1 [shape = 'u32[144,128]{1,0:T(1,128)}', space=vmem, size = 0x12000, scoped, tag = 'internal scratch']
  %s0 = inlined_call_operand.hbm [shape: f32[16,32], index: 0, kind: input, shape index: {}]
  %s1 = inlined_call_operand.hbm [shape: f32[1,32,256], index: 1, kind: input, shape index: {}]
  %s2 = inlined_call_operand.vmem [shape: f32[1,1,256], index: 2, kind: input, shape index: {}]
  %s3 = inlined_call_operand.hbm [shape: f32[16,128], index: 3, kind: output, shape index: {}]
  %s4 = sld [smem:[#allocation0]]
  $region30: #{tpu_custom_call.1} parent=0
    _
  %s6 = ssub.s32 1, %s4
  %s7 = scalar_select 0, %s6, %s4
  $region1: #{tpu_custom_call.1} parent=0
    #allocation2 [shape = 'u8[8192]{0}', space=vmem, size = 0x2000, scoped, tag = 'input window, operand 0, single buffered']
    #allocation3 [shape = 's32[1]{0}', space=sflag, size = 0x4, scoped, tag = 'scoped memory for tpu_custom_call.1']
    #allocation4 [shape = 's32[1]{0}', space=sflag, size = 0x4, scoped, tag = 'scoped memory for tpu_custom_call.1']
    #allocation5 [shape = 'u8[32768]{0}', space=vmem, size = 0x8000, scoped, tag = 'input window, operand 1, single buffered']
    #allocation6 [shape = 's32[1]{0}', space=sflag, size = 0x4, scoped, tag = 'scoped memory for tpu_custom_call.1']
    #allocation7 [shape = 'u8[8192]{0}', space=vmem, size = 0x2000, scoped, tag = 'output window, operand 0, single buffered']
    %8 = vsyncpa [#allocation3], 0
    %9 = vsyncpa [#allocation6], 0
    %10 = vsyncpa [#allocation4], 0
    // Predicated region
    $region2: #{tpu_custom_call.1} parent=1 // pred_check
      _
    $region3: #{tpu_custom_call.1} parent=1 // pred_check_branch
      %12 = sbr.rel (0) target = $region5
    $region4: #{tpu_custom_call.1} parent=1 // pred_region
      %s14 = ssub.s32 256, 256
      %15 = vsyncadd [#allocation3], %s14
      %s16 = sshll.u32 [#allocation2], 4
      %s17 = int_to_ptr.vmem [resolvable:$true] %s16
      %22 = dma.hbm_to_vmem [thread:$0]  %s0, 256, %s17, [#allocation3], 128, 128, 8
    $region5: #{tpu_custom_call.1} parent=1 // pred_fallthru
      _
    // Predicated region
    $region6: #{tpu_custom_call.1} parent=1 // pred_check
      _
    $region7: #{tpu_custom_call.1} parent=1 // pred_check_branch
      %24 = sbr.rel (0) target = $region9
    $region8: #{tpu_custom_call.1} parent=1 // pred_region
      %s26 = ssub.s32 1024, 1024
      %27 = vsyncadd [#allocation6], %s26
      %s28 = sshll.u32 [#allocation5], 4
      %s29 = int_to_ptr.vmem [resolvable:$true] %s28
      %34 = dma.hbm_to_vmem [thread:$0]  %s1, 1024, %s29, [#allocation6], 256, 256, 16
    $region9: #{tpu_custom_call.1} parent=1 // pred_fallthru
      _
    // Predicated region
    $region10: #{tpu_custom_call.1} parent=1 // pred_check
      _
    $region11: #{tpu_custom_call.1} parent=1 // pred_check_branch
      %36 = sbr.rel (0) target = $region13
    $region12: #{tpu_custom_call.1} parent=1 // pred_region
      _
    $region13: #{tpu_custom_call.1} parent=1 // pred_fallthru
      _
    // Predicated region
    $region14: #{tpu_custom_call.1} parent=1 // pred_check
      _
    $region15: #{tpu_custom_call.1} parent=1 // pred_check_branch
      %38 = sbr.rel (0) target = $region17
    $region16: #{tpu_custom_call.1} parent=1 // pred_region
      %39 = dma.done [#allocation3], 256
    $region17: #{tpu_custom_call.1} parent=1 // pred_fallthru
      _
    // Predicated region
    $region18: #{tpu_custom_call.1} parent=1 // pred_check
      _
    $region19: #{tpu_custom_call.1} parent=1 // pred_check_branch
      %41 = sbr.rel (0) target = $region21
    $region20: #{tpu_custom_call.1} parent=1 // pred_region
      %42 = dma.done [#allocation6], 1024
    $region21: #{tpu_custom_call.1} parent=1 // pred_fallthru
      _
    %v43 = vld [vmem:[#allocation2] sm:$0xff]
    %v44 = vld [vmem:[#allocation2 + $0x8] sm:$0xff]
    %v45 = vld [vmem:[#allocation5] sm:$0xff]
    %v46 = vld [vmem:[#allocation5 + $0x8] sm:$0xff]
    %v47 = vld [vmem:[#allocation5 + $0x10] sm:$0xff]
    %v48 = vld [vmem:[#allocation5 + $0x18] sm:$0xff]
    %v49 = vld [vmem:[#allocation5 + $0x20] sm:$0xff]
    %v50 = vld [vmem:[#allocation5 + $0x28] sm:$0xff]
    %v51 = vld [vmem:[#allocation5 + $0x30] sm:$0xff]
    %v52 = vld [vmem:[#allocation5 + $0x38] sm:$0xff]
    %v53 = vld [vmem:[%s2] sm:$0x3]
    %v55 = vlaneseq
    %v56 = vshrl.u32 %v55, 7
    %v57 = vsub.s32 0, %v56
    %v58 = vrot.slane %v53, %v57
    %v59 = vlaneseq
    %v60 = vshrl.u32 %v59, 7
    %v61 = vsub.s32 1, %v60
    %v62 = vrot.slane %v53, %v61
    %vm65 = vcmask 261120
    %v67 = vsel %vm65, %v43, 0
    %v70 = vsel %vm65, %v44, 0
    %72 = vmatprep.subr.mxu0 %v46
    %73 = vmatpush1.msra.mxu0 %v45
    %74 = vmatprep.subr.mxu0 %v48
    %75 = vmatpush1.msra.mxu0 %v47
    %76 = vmatprep.subr.mxu0 %v50
    %77 = vmatpush1.msra.mxu0 %v49
    %78 = vmatprep.subr.mxu0 %v52
    %79 = vmatpush1.msra.mxu0 %v51
    %80 = vmatprep.subr.mxu0 0.0
    %81 = vmatpush1.msra.mxu0 0.0
    %82 = vmatprep.subr.mxu0 0.0
    %83 = vmatpush1.msra.mxu0 0.0
    %84 = vmatprep.subr.mxu0 0.0
    %85 = vmatpush1.msra.mxu0 0.0
    %86 = vmatprep.subr.mxu0 0.0
    %87 = vmatpush1.msra.mxu0 0.0
    %88 = vmatprep.subr.mxu0 0.0
    %89 = vmatpush1.msra.mxu0 0.0
    %90 = vmatprep.subr.mxu0 0.0
    %91 = vmatpush1.msra.mxu0 0.0
    %92 = vmatprep.subr.mxu0 0.0
    %93 = vmatpush1.msra.mxu0 0.0
    %94 = vmatprep.subr.mxu0 0.0
    %95 = vmatpush1.msra.mxu0 0.0
    %96 = vmatprep.subr.mxu0 0.0
    %97 = vmatpush1.msra.mxu0 0.0
    %98 = vmatprep.subr.mxu0 0.0
    %99 = vmatpush1.msra.mxu0 0.0
    %100 = vmatprep.subr.mxu0 0.0
    %101 = vmatpush1.msra.mxu0 0.0
    %102 = vmatprep.subr.mxu0 0.0
    %103 = vmatpush1.msra.mxu0 0.0
    %104 = vmatprep.subr.mxu0 0.0
    %105 = vmatpush1.msra.mxu0 0.0
    %106 = vmatprep.subr.mxu0 0.0
    %107 = vmatpush1.msra.mxu0 0.0
    %108 = vmatprep.subr.mxu0 0.0
    %109 = vmatpush1.msra.mxu0 0.0
    %110 = vmatprep.subr.mxu0 0.0
    %111 = vmatpush1.msra.mxu0 0.0
    %112 = vmatprep.subr.mxu0 0.0
    %113 = vmatpush1.msra.mxu0 0.0
    %114 = vmatprep.subr.mxu0 0.0
    %115 = vmatpush1.msra.mxu0 0.0
    %116 = vmatprep.subr.mxu0 0.0
    %117 = vmatpush1.msra.mxu0 0.0
    %118 = vmatprep.subr.mxu0 0.0
    %119 = vmatpush1.msra.mxu0 0.0
    %120 = vmatprep.subr.mxu0 0.0
    %121 = vmatpush1.msra.mxu0 0.0
    %122 = vmatprep.subr.mxu0 0.0
    %123 = vmatpush1.msra.mxu0 0.0
    %124 = vmatprep.subr.mxu0 0.0
    %125 = vmatpush1.msra.mxu0 0.0
    %126 = vmatprep.subr.mxu0 0.0
    %127 = vmatpush1.msra.mxu0 0.0
    %128 = vmatprep.subr.mxu0 0.0
    %129 = vmatpush1.msra.mxu0 0.0
    %130 = vmatprep.subr.mxu0 0.0
    %131 = vmatpush1.msra.mxu0 0.0
    %132 = vmatprep.subr.mxu0 0.0
    %133 = vmatpush1.msra.mxu0 0.0
    %134 = vmatprep.subr.mxu0 0.0
    %135 = vmatpush1.msra.mxu0 0.0
    %136 = vmatprep.mubr.f32.mxu0 0.0
    %137 = vmatmul.mubr.f32.gmra.mrb[0].mxu0 %v67
    %v138 = vpop.f32.mrb[0].mxu0
    %v139 = vadd.f32 %v58, %v138
    %v140 = vpop.f32.mrb[0].mxu0
    %v141 = vadd.f32 %v62, %v140
    %142 = vmatprep.mubr.f32.mxu0 0.0
    %143 = vmatmul.mubr.f32.gmra.mrb[0].mxu0 %v70
    %v144 = vpop.f32.mrb[0].mxu0
    %v145 = vadd.f32 %v58, %v144
    %v146 = vpop.f32.mrb[0].mxu0
    %v147 = vadd.f32 %v62, %v146
    %148 = vdwg.mxu0
    %v149 = vsub.f32 0.0, %v141
    %v150 = vsub.f32 0.0, %v147
    %v151 = vmul.f32 %v149, 1.442695
    %v152 = vpow.pop %v151
    %v153 = vmul.f32 %v150, 1.442695
    %v154 = vpow.pop %v153
    %v155 = vadd.f32 %v152, 1.0
    %v156 = vadd.f32 %v154, 1.0
    %v157 = vrcp.pop %v155
    %v158 = vrcp.pop %v156
    %v159 = vmul.f32 %v139, %v157
    %v160 = vmul.f32 %v145, %v158
    %161 = vst [vmem:[#allocation7] sm:$0xff] %v159
    %162 = vst [vmem:[#allocation7 + $0x8] sm:$0xff] %v160
    // Predicated region
    $region22: #{tpu_custom_call.1} parent=1 // pred_check
      _
    $region23: #{tpu_custom_call.1} parent=1 // pred_check_branch
      %164 = sbr.rel (0) target = $region25
    $region24: #{tpu_custom_call.1} parent=1 // pred_region
      %s166 = ssub.s32 256, 256
      %167 = vsyncadd [#allocation4], %s166
      %s168 = sshll.u32 [#allocation7], 4
      %s169 = int_to_ptr.vmem [resolvable:$true] %s168
      %174 = dma.vmem_to_hbm [thread:$0]  %s169, 256, %s3, [#allocation4], 128, 128, 8
    $region25: #{tpu_custom_call.1} parent=1 // pred_fallthru
      _
    // Predicated region
    $region26: #{tpu_custom_call.1} parent=1 // pred_check
      _
    $region27: #{tpu_custom_call.1} parent=1 // pred_check_branch
      %176 = sbr.rel (0) target = $region29
    $region28: #{tpu_custom_call.1} parent=1 // pred_region
      %177 = dma.done [#allocation4], 256
    $region29: #{tpu_custom_call.1} parent=1 // pred_fallthru
      _
    %178 = vsyncpa [#allocation3], 1
    %179 = vsyncpa [#allocation6], 1
    %180 = vsyncpa [#allocation4], 1

</llo_original>
